<compile_context>
chip_gen: v6e
topology: v6e:2x2x1
jax: 0.10.0
libtpu: 0.0.40
codegen_flags: <defaults>
</compile_context>

<pallas_src>
import functools

import jax
import jax.numpy as jnp
from jax.experimental import pallas as pl
from jax.experimental.pallas import tpu as pltpu


def _round_up(x, m):
    return (x + m - 1) // m * m


def _extractor_kernel(x_ref, w1_ref, b1_ref, w2_ref, b2_ref,
                      hidden_ref, fc2_ref, *, H, slab_pad, store_act):
    x = x_ref[...]                                            # (TB, Din)

    # fc1: Linear(Din -> H)
    h1 = jnp.dot(x, w1_ref[...],
                 preferred_element_type=jnp.float32) + b1_ref[...]

    # act: ReLU
    a1 = jnp.maximum(h1, 0.0)

    if store_act:
        # Pack hook('fc1') and hook('act') into one lane-dense slab by writing
        # static sub-slices directly (no concat temp); HBM writeback is still
        # one dense (TB, slab_w) DMA.
        hidden_ref[:, :H] = h1
        hidden_ref[:, H:2 * H] = a1
        if slab_pad:
            hidden_ref[:, 2 * H:] = jnp.zeros((h1.shape[0], slab_pad),
                                              jnp.float32)
    else:
        # H is a 128-lane multiple: store only fc1; 'act' is recomputed in the
        # wrapper (free in the consumer-side copy) -> halves slab writeback.
        hidden_ref[...] = h1

    # fc2: Linear(H -> Dout_pad)  == hook('fc2') == result (pad lanes are zero
    # because w2/b2 are zero-padded in the wrapper).
    fc2_ref[...] = jnp.dot(a1, w2_ref[...],
                           preferred_element_type=jnp.float32) + b2_ref[...]


def intermediate_extractor(x, w1, b1, w2, b2, *, vmem_tile_budget=8 << 20):
    """Returns list of (name, output) tuples, like IntermediateExtractor.forward."""
    B, Din = x.shape
    H = w1.shape[1]
    Dout = w2.shape[1]

    # fc1(+act) slab layout: drop the redundant ReLU copy when H is already a
    # 128-lane multiple (act is recomputed in the wrapper from fc1).
    store_act = (H % 128 != 0)
    slab_w = _round_up(2 * H, 128) if store_act else H
    slab_pad = (slab_w - 2 * H) if store_act else 0

    # Lane-dense fc2: pad weight/bias columns to a 128 multiple, slice later.
    Dout_pad = _round_up(Dout, 128)

    # ---- Batch tile selection (bandwidth-bound kernel) ----------------------
    # Size TB so the double-buffered per-step activation traffic fits the
    # budget (fat tiles amortize per-step overhead), but keep >= 2 grid steps
    # so both v7x TensorCores get work on the "parallel" axis.
    row_bytes = 4 * (Din + slab_w + Dout_pad)
    tb_budget = max(8, (vmem_tile_budget // (2 * row_bytes)) // 8 * 8)
    B8 = _round_up(B, 8)
    half_cap = max(8, _round_up(B8 // 2, 8)) if B8 >= 16 else B8
    TB = min(tb_budget, half_cap)
    B_pad = _round_up(B, TB)
    grid = (B_pad // TB,)

    x_p = x if B_pad == B else jnp.pad(x, ((0, B_pad - B), (0, 0)))

    # Biases kept 2D (1, F) for TPU-friendly broadcasting inside the kernel.
    b1_2d = b1.reshape(1, H)
    w2_p = w2 if Dout_pad == Dout else jnp.pad(w2, ((0, 0), (0, Dout_pad - Dout)))
    b2_2d = (b2 if Dout_pad == Dout
             else jnp.pad(b2, (0, Dout_pad - Dout))).reshape(1, Dout_pad)

    # Explicit scoped-VMEM limit: weights + double-buffered tiles + headroom.
    weight_bytes = 4 * (Din * H + H + H * Dout_pad + Dout_pad)
    vmem_need = 4 * weight_bytes + 4 * TB * row_bytes + (2 << 20)
    vmem_limit = int(min(max(vmem_need, 16 << 20), 64 << 20))

    flops = 2 * B_pad * (Din * H + H * Dout_pad)
    bytes_accessed = 4 * (B_pad * Din + Din * H + H + H * Dout_pad + Dout_pad
                          + B_pad * slab_w + B_pad * Dout_pad)

    kernel = functools.partial(_extractor_kernel, H=H, slab_pad=slab_pad,
                               store_act=store_act)

    hidden_slab, fc2_padded = pl.pallas_call(
        kernel,
        out_shape=(
            jax.ShapeDtypeStruct((B_pad, slab_w), jnp.float32),
            jax.ShapeDtypeStruct((B_pad, Dout_pad), jnp.float32),
        ),
        grid=grid,
        in_specs=[
            pl.BlockSpec((TB, Din), lambda i: (i, 0)),        # x tile (pipelined)
            pl.BlockSpec((Din, H), lambda i: (0, 0)),         # w1 (VMEM-resident)
            pl.BlockSpec((1, H), lambda i: (0, 0)),           # b1
            pl.BlockSpec((H, Dout_pad), lambda i: (0, 0)),    # w2 (padded lanes)
            pl.BlockSpec((1, Dout_pad), lambda i: (0, 0)),    # b2
        ],
        out_specs=(
            pl.BlockSpec((TB, slab_w), lambda i: (i, 0)),     # fc1 [| act] slab
            pl.BlockSpec((TB, Dout_pad), lambda i: (i, 0)),   # fc2 / result
        ),
        compiler_params=pltpu.CompilerParams(
            dimension_semantics=("parallel",),
            vmem_limit_bytes=vmem_limit,
        ),
        cost_estimate=pl.CostEstimate(
            flops=flops, transcendentals=0, bytes_accessed=bytes_accessed),
    )(x_p, w1, b1_2d, w2_p, b2_2d)

    # Layout plumbing in the wrapper: unpack slab / strip padding only when
    # actually needed (avoids extra HBM round-trips in the aligned case).
    need_b_slice = (B_pad != B)
    if store_act:
        fc1_out = hidden_slab[:B, :H]
        act_out = hidden_slab[:B, H:2 * H]
    else:
        fc1_out = hidden_slab[:B] if need_b_slice else hidden_slab
        act_out = jnp.maximum(fc1_out, 0.0)   # recomputed; fuses with the copy
    if need_b_slice or Dout_pad != Dout:
        fc2_out = fc2_padded[:B, :Dout]
    else:
        fc2_out = fc2_padded

    # Mirror the PyTorch module's return semantics: hooked submodule outputs
    # in registration order, then ('result', final_output).
    return [("fc1", fc1_out), ("act", act_out), ("fc2", fc2_out),
            ("result", fc2_out)]


def _init_linear(key, fan_in, fan_out):
    """Deterministic init matching torch.nn.Linear default (U[-1/sqrt(fan_in), ...]).
    Weight returned pre-transposed to (fan_in, fan_out)."""
    kw, kb = jax.random.split(key)
    bound = 1.0 / jnp.sqrt(fan_in)
    w = jax.random.uniform(kw, (fan_in, fan_out), jnp.float32, -bound, bound)
    b = jax.random.uniform(kb, (fan_out,), jnp.float32, -bound, bound)
    return w, b


def _check(x, w1, b1, w2, b2, **kw):
    outputs = intermediate_extractor(x, w1, b1, w2, b2, **kw)
    for _, arr in outputs:
        jax.block_until_ready(arr)

    h1_ref = x @ w1 + b1
    a1_ref = jnp.maximum(h1_ref, 0.0)
    y_ref = a1_ref @ w2 + b2

    names = [n for n, _ in outputs]
    assert names == ["fc1", "act", "fc2", "result"]
    assert outputs[0][1].shape == h1_ref.shape
    assert outputs[1][1].shape == a1_ref.shape
    assert outputs[2][1].shape == y_ref.shape
    assert jnp.allclose(outputs[0][1], h1_ref, atol=1e-4, rtol=1e-4)
    assert jnp.allclose(outputs[1][1], a1_ref, atol=1e-4, rtol=1e-4)
    assert jnp.allclose(outputs[2][1], y_ref, atol=1e-4, rtol=1e-4)
    assert jnp.allclose(outputs[3][1], y_ref, atol=1e-4, rtol=1e-4)


if __name__ == "__main__":
    key = jax.random.PRNGKey(0)
    k_x, k_fc1, k_fc2, k_x2, k_fc1b, k_fc2b = jax.random.split(key, 6)

    # Main case (H=64 -> packed [fc1|act] slab): 2 parallel grid steps at TB=256.
    B, Din, H, Dout = 512, 32, 64, 32
    x = jax.random.normal(k_x, (B, Din), jnp.float32)
    w1, b1 = _init_linear(k_fc1, Din, H)
    w2, b2 = _init_linear(k_fc2, H, Dout)
    _check(x, w1, b1, w2, b2)

    # Ragged-batch case: exercises the B -> B_pad padding path.
    x_small = jax.random.normal(k_x2, (20, Din), jnp.float32)
    _check(x_small, w1, b1, w2, b2)

    # H multiple of 128: exercises the "store fc1 only, recompute act" path.
    H2 = 128
    w1b, b1b = _init_linear(k_fc1b, Din, H2)
    w2b, b2b = _init_linear(k_fc2b, H2, Dout)
    _check(x, w1b, b1b, w2b, b2b)

    print("KERNEL_OK")
</pallas_src>

<mosaic_0001>
module attributes {stable_mosaic.version = 11 : i64} {
  func.func @_extractor_kernel(%arg0: i32, %arg1: memref<256x32xf32, #tpu.memory_space<vmem>>, %arg2: memref<32x64xf32, #tpu.memory_space<vmem>>, %arg3: memref<1x64xf32, #tpu.memory_space<vmem>>, %arg4: memref<64x128xf32, #tpu.memory_space<vmem>>, %arg5: memref<1x128xf32, #tpu.memory_space<vmem>>, %arg6: memref<256x128xf32, #tpu.memory_space<vmem>>, %arg7: memref<256x128xf32, #tpu.memory_space<vmem>>) attributes {dimension_semantics = [#tpu.dimension_semantics<parallel>], iteration_bounds = array<i64: 2>, scalar_prefetch = 0 : i64, scratch_operands = 0 : i64, tpu.core_type = #tpu.core_type<tc>, window_params = [{transform_indices = @transform_0, window_bounds = array<i64: 256, 32>}, {pipeline_mode = #tpu.pipeline_mode<synchronous>, transform_indices = @transform_1, window_bounds = array<i64: 32, 64>}, {pipeline_mode = #tpu.pipeline_mode<synchronous>, transform_indices = @transform_2, window_bounds = array<i64: 1, 64>}, {pipeline_mode = #tpu.pipeline_mode<synchronous>, transform_indices = @transform_3, window_bounds = array<i64: 64, 128>}, {pipeline_mode = #tpu.pipeline_mode<synchronous>, transform_indices = @transform_4, window_bounds = array<i64: 1, 128>}, {transform_indices = @transform_5, window_bounds = array<i64: 256, 128>}, {transform_indices = @transform_6, window_bounds = array<i64: 256, 128>}]} {
    %c0 = arith.constant 0 : index
    %c0_0 = arith.constant 0 : index
    %0 = vector.load %arg1[%c0, %c0_0] : memref<256x32xf32, #tpu.memory_space<vmem>>, vector<256x32xf32>
    %c0_1 = arith.constant 0 : index
    %c0_2 = arith.constant 0 : index
    %1 = vector.load %arg2[%c0_1, %c0_2] : memref<32x64xf32, #tpu.memory_space<vmem>>, vector<32x64xf32>
    %cst = arith.constant dense<0.000000e+00> : vector<256x64xf32>
    %2 = tpu.matmul %0, %1, %cst {dimension_numbers = #tpu.dot_dimension_numbers<[1], [0], [0], [1], [0, 0, 1, 1], [], []>} : vector<256x32xf32>, vector<32x64xf32>, vector<256x64xf32> -> vector<256x64xf32>
    %c0_3 = arith.constant 0 : index
    %c0_4 = arith.constant 0 : index
    %3 = vector.load %arg3[%c0_3, %c0_4] : memref<1x64xf32, #tpu.memory_space<vmem>>, vector<1x64xf32>
    %4 = vector.broadcast %3 : vector<1x64xf32> to vector<256x64xf32>
    %5 = arith.addf %2, %4 : vector<256x64xf32>
    %cst_5 = arith.constant 0.000000e+00 : f32
    %6 = vector.broadcast %cst_5 : f32 to vector<256x64xf32>
    %7 = arith.maximumf %5, %6 : vector<256x64xf32>
    %c0_6 = arith.constant 0 : index
    %c0_7 = arith.constant 0 : index
    %8 = vector.load %arg6[%c0_6, %c0_7] : memref<256x128xf32, #tpu.memory_space<vmem>>, vector<256x64xf32>
    tpu.vector_store %arg6[%c0_6, %c0_7], %5 {strides = array<i32>} : memref<256x128xf32, #tpu.memory_space<vmem>>, vector<256x64xf32>,
    %c0_8 = arith.constant 0 : index
    %c64 = arith.constant 64 : index
    %9 = vector.load %arg6[%c0_8, %c64] : memref<256x128xf32, #tpu.memory_space<vmem>>, vector<256x64xf32>
    tpu.vector_store %arg6[%c0_8, %c64], %7 {strides = array<i32>} : memref<256x128xf32, #tpu.memory_space<vmem>>, vector<256x64xf32>,
    %c0_9 = arith.constant 0 : index
    %c0_10 = arith.constant 0 : index
    %10 = vector.load %arg4[%c0_9, %c0_10] : memref<64x128xf32, #tpu.memory_space<vmem>>, vector<64x128xf32>
    %cst_11 = arith.constant dense<0.000000e+00> : vector<256x128xf32>
    %11 = tpu.matmul %7, %10, %cst_11 {dimension_numbers = #tpu.dot_dimension_numbers<[1], [0], [0], [1], [0, 0, 1, 1], [], []>} : vector<256x64xf32>, vector<64x128xf32>, vector<256x128xf32> -> vector<256x128xf32>
    %c0_12 = arith.constant 0 : index
    %c0_13 = arith.constant 0 : index
    %12 = vector.load %arg5[%c0_12, %c0_13] : memref<1x128xf32, #tpu.memory_space<vmem>>, vector<1x128xf32>
    %13 = vector.broadcast %12 : vector<1x128xf32> to vector<256x128xf32>
    %14 = arith.addf %11, %13 : vector<256x128xf32>
    %c0_14 = arith.constant 0 : index
    %c0_15 = arith.constant 0 : index
    %15 = vector.load %arg7[%c0_14, %c0_15] : memref<256x128xf32, #tpu.memory_space<vmem>>, vector<256x128xf32>
    tpu.vector_store %arg7[%c0_14, %c0_15], %14 {strides = array<i32>} : memref<256x128xf32, #tpu.memory_space<vmem>>, vector<256x128xf32>,
    return
  }
  func.func @transform_0(%arg0: i32) -> (i32, i32) {
    %c0_i32 = arith.constant 0 : i32
    %c0_i32_0 = arith.constant 0 : i32
    return %arg0, %c0_i32 : i32, i32
  }
  func.func @transform_1(%arg0: i32) -> (i32, i32) {
    %c0_i32 = arith.constant 0 : i32
    %c0_i32_0 = arith.constant 0 : i32
    %c0_i32_1 = arith.constant 0 : i32
    return %c0_i32, %c0_i32_0 : i32, i32
  }
  func.func @transform_2(%arg0: i32) -> (i32, i32) {
    %c0_i32 = arith.constant 0 : i32
    %c0_i32_0 = arith.constant 0 : i32
    %c0_i32_1 = arith.constant 0 : i32
    return %c0_i32, %c0_i32_0 : i32, i32
  }
  func.func @transform_3(%arg0: i32) -> (i32, i32) {
    %c0_i32 = arith.constant 0 : i32
    %c0_i32_0 = arith.constant 0 : i32
    %c0_i32_1 = arith.constant 0 : i32
    return %c0_i32, %c0_i32_0 : i32, i32
  }
  func.func @transform_4(%arg0: i32) -> (i32, i32) {
    %c0_i32 = arith.constant 0 : i32
    %c0_i32_0 = arith.constant 0 : i32
    %c0_i32_1 = arith.constant 0 : i32
    return %c0_i32, %c0_i32_0 : i32, i32
  }
  func.func @transform_5(%arg0: i32) -> (i32, i32) {
    %c0_i32 = arith.constant 0 : i32
    %c0_i32_0 = arith.constant 0 : i32
    return %arg0, %c0_i32 : i32, i32
  }
  func.func @transform_6(%arg0: i32) -> (i32, i32) {
    %c0_i32 = arith.constant 0 : i32
    %c0_i32_0 = arith.constant 0 : i32
    return %arg0, %c0_i32 : i32, i32
  }
}

</mosaic_0001>

<llo_original>
// kernel: tpu_custom_call.1
$region0: #{tpu_custom_call.1}
  #allocation0 [shape = 'u32[]', space=smem, size = 0x4, offset = 0x4, fixed_abs, tag = 'smem constant byte address 0x4 - core index']
  #allocation1 [shape = 'u32[144,128]{1,0:T(1,128)}', space=vmem, size = 0x12000, scoped, tag = 'internal scratch']
  %s0 = inlined_call_operand.vmem [shape: f32[512,32], index: 0, kind: input, shape index: {}]
  %s1 = inlined_call_operand.vmem [shape: f32[32,64], index: 1, kind: input, shape index: {}]
  %s2 = inlined_call_operand.vmem [shape: f32[1,64], index: 2, kind: input, shape index: {}]
  %s3 = inlined_call_operand.vmem [shape: f32[64,128], index: 3, kind: input, shape index: {}]
  %s4 = inlined_call_operand.vmem [shape: f32[1,128], index: 4, kind: input, shape index: {}]
  %s5 = inlined_call_operand.hbm [shape: f32[512,128], index: 5, kind: output, shape index: {0}]
  %s6 = inlined_call_operand.hbm [shape: f32[512,128], index: 6, kind: output, shape index: {1}]
  %7 = xla_tuple %s5, %s6
  %s8 = sld [smem:[#allocation0]]
  $region61: #{tpu_custom_call.1} parent=0
    _
  %s10 = ssub.s32 1, %s8
  %s11 = scalar_select 0, %s10, %s8
  $region1: #{tpu_custom_call.1} parent=0
    #allocation2 [shape = 'u8[262144]{0}', space=vmem, size = 0x40000, scoped, tag = 'output window, operand 0']
    #allocation3 [shape = 's32[2]{0}', space=sflag, size = 0x8, scoped, tag = 'scoped memory for tpu_custom_call.1']
    #allocation4 [shape = 'u8[262144]{0}', space=vmem, size = 0x40000, scoped, tag = 'output window, operand 1']
    #allocation5 [shape = 's32[2]{0}', space=sflag, size = 0x8, scoped, tag = 'scoped memory for tpu_custom_call.1']
    %12 = vsyncpa [#allocation3], 0
    %s13 = scalar_lea.sflag [#allocation3], 1
    %14 = vsyncpa %s13, 0
    %15 = vsyncpa [#allocation5], 0
    %s16 = scalar_lea.sflag [#allocation5], 1
    %17 = vsyncpa %s16, 0
    loop: start=0, step=1, limit=4
    $region2: #{tpu_custom_call.1} parent=1 // loop_pre_header
      _
    $region3: #{tpu_custom_call.1} parent=1 // loop_header
      %s19 = sphi 0, %s23
      %p20 = scmp.ge.s32.totalorder %s19, 4
      %s29 = sphi 0, %s31
      %s32 = sphi 0, %s29
      %s33 = sphi 0, %s32
      %s49 = sphi 0, %s33
      %s53 = sphi 0, %s53
      %s55 = sphi 0, %s53
      %s56 = sphi 0, %s55
      %s70 = sphi 0, %s56
      %s74 = sphi 0, %s74
      %s76 = sphi 0, %s74
      %s77 = sphi 0, %s76
      %s91 = sphi 0, %s77
      %s95 = sphi 0, %s95
      %s97 = sphi 0, %s95
      %s98 = sphi 0, %s97
      %s112 = sphi 0, %s98
      %s116 = sphi 0, %s116
      %s118 = sphi 0, %s116
      %s119 = sphi 0, %s118
      %s133 = sphi 0, %s119
      %s139 = sphi 0, %s141
      %s142 = sphi 0, %s139
      %s143 = sphi 0, %s142
      %s159 = sphi 0, %s143
      %s165 = sphi 0, %s167
      %s168 = sphi 0, %s165
      %s169 = sphi 0, %s168
      %s185 = sphi 0, %s169
    $region4: #{tpu_custom_call.1} parent=1 // loop_header_branch
      %22 = sbr.rel (%p20) target = $region8
    $region5: #{tpu_custom_call.1} parent=1 // loop_body
      %s24 = ssub.s32 %s19, 1
      %s25 = ssub.s32 %s19, 2
      %s26 = sadd.s32 %s19, 1
      %s27 = ssub.s32 %s19, %s26
      %p28 = scmp.eq.s32.totalorder %s27, 0
      %s30 = sadd.s32 %s29, 1
      %s31 = scalar_select %p28, %s29, %s30
      %p34 = pneg %p28
      %p35 = scmp.eq.s32.totalorder %s19, 1
      %p36 = por %p34, %p35
      %p37 = scmp.ne.s32.totalorder %s29, %s32
      %p38 = scmp.eq.s32.totalorder %s19, 0
      %p39 = por %p37, %p38
      %p40 = scmp.ne.s32.totalorder %s29, %s32
      %p41 = scmp.eq.s32.totalorder %s24, 1
      %p42 = por %p40, %p41
      %p43 = scmp.ne.s32.totalorder %s32, %s33
      %p44 = scmp.eq.s32.totalorder %s24, 0
      %p45 = por %p43, %p44
      %p46 = scmp.ne.s32.totalorder %s32, %s33
      %p47 = scmp.eq.s32.totalorder %s25, 1
      %p48 = por %p46, %p47
      %p50 = scmp.ne.s32.totalorder %s33, %s49
      %p51 = scmp.eq.s32.totalorder %s25, 0
      %p52 = por %p50, %p51
      %s54 = sadd.s32 %s53, 1
      %p57 = scmp.eq.s32.totalorder %s19, 1
      %p58 = scmp.ne.s32.totalorder %s53, %s55
      %p59 = scmp.eq.s32.totalorder %s19, 0
      %p60 = por %p58, %p59
      %p61 = scmp.ne.s32.totalorder %s53, %s55
      %p62 = scmp.eq.s32.totalorder %s24, 1
      %p63 = por %p61, %p62
      %p64 = scmp.ne.s32.totalorder %s55, %s56
      %p65 = scmp.eq.s32.totalorder %s24, 0
      %p66 = por %p64, %p65
      %p67 = scmp.ne.s32.totalorder %s55, %s56
      %p68 = scmp.eq.s32.totalorder %s25, 1
      %p69 = por %p67, %p68
      %p71 = scmp.ne.s32.totalorder %s56, %s70
      %p72 = scmp.eq.s32.totalorder %s25, 0
      %p73 = por %p71, %p72
      %s75 = sadd.s32 %s74, 1
      %p78 = scmp.eq.s32.totalorder %s19, 1
      %p79 = scmp.ne.s32.totalorder %s74, %s76
      %p80 = scmp.eq.s32.totalorder %s19, 0
      %p81 = por %p79, %p80
      %p82 = scmp.ne.s32.totalorder %s74, %s76
      %p83 = scmp.eq.s32.totalorder %s24, 1
      %p84 = por %p82, %p83
      %p85 = scmp.ne.s32.totalorder %s76, %s77
      %p86 = scmp.eq.s32.totalorder %s24, 0
      %p87 = por %p85, %p86
      %p88 = scmp.ne.s32.totalorder %s76, %s77
      %p89 = scmp.eq.s32.totalorder %s25, 1
      %p90 = por %p88, %p89
      %p92 = scmp.ne.s32.totalorder %s77, %s91
      %p93 = scmp.eq.s32.totalorder %s25, 0
      %p94 = por %p92, %p93
      %s96 = sadd.s32 %s95, 1
      %p99 = scmp.eq.s32.totalorder %s19, 1
      %p100 = scmp.ne.s32.totalorder %s95, %s97
      %p101 = scmp.eq.s32.totalorder %s19, 0
      %p102 = por %p100, %p101
      %p103 = scmp.ne.s32.totalorder %s95, %s97
      %p104 = scmp.eq.s32.totalorder %s24, 1
      %p105 = por %p103, %p104
      %p106 = scmp.ne.s32.totalorder %s97, %s98
      %p107 = scmp.eq.s32.totalorder %s24, 0
      %p108 = por %p106, %p107
      %p109 = scmp.ne.s32.totalorder %s97, %s98
      %p110 = scmp.eq.s32.totalorder %s25, 1
      %p111 = por %p109, %p110
      %p113 = scmp.ne.s32.totalorder %s98, %s112
      %p114 = scmp.eq.s32.totalorder %s25, 0
      %p115 = por %p113, %p114
      %s117 = sadd.s32 %s116, 1
      %p120 = scmp.eq.s32.totalorder %s19, 1
      %p121 = scmp.ne.s32.totalorder %s116, %s118
      %p122 = scmp.eq.s32.totalorder %s19, 0
      %p123 = por %p121, %p122
      %p124 = scmp.ne.s32.totalorder %s116, %s118
      %p125 = scmp.eq.s32.totalorder %s24, 1
      %p126 = por %p124, %p125
      %p127 = scmp.ne.s32.totalorder %s118, %s119
      %p128 = scmp.eq.s32.totalorder %s24, 0
      %p129 = por %p127, %p128
      %p130 = scmp.ne.s32.totalorder %s118, %s119
      %p131 = scmp.eq.s32.totalorder %s25, 1
      %p132 = por %p130, %p131
      %p134 = scmp.ne.s32.totalorder %s119, %s133
      %p135 = scmp.eq.s32.totalorder %s25, 0
      %p136 = por %p134, %p135
      %s137 = ssub.s32 %s19, %s26
      %p138 = scmp.eq.s32.totalorder %s137, 0
      %s140 = sadd.s32 %s139, 1
      %s141 = scalar_select %p138, %s139, %s140
      %p144 = pneg %p138
      %p145 = scmp.eq.s32.totalorder %s19, 1
      %p146 = por %p144, %p145
      %p147 = scmp.ne.s32.totalorder %s139, %s142
      %p148 = scmp.eq.s32.totalorder %s19, 0
      %p149 = por %p147, %p148
      %p150 = scmp.ne.s32.totalorder %s139, %s142
      %p151 = scmp.eq.s32.totalorder %s24, 1
      %p152 = por %p150, %p151
      %p153 = scmp.ne.s32.totalorder %s142, %s143
      %p154 = scmp.eq.s32.totalorder %s24, 0
      %p155 = por %p153, %p154
      %p156 = scmp.ne.s32.totalorder %s142, %s143
      %p157 = scmp.eq.s32.totalorder %s25, 1
      %p158 = por %p156, %p157
      %p160 = scmp.ne.s32.totalorder %s143, %s159
      %p161 = scmp.eq.s32.totalorder %s25, 0
      %p162 = por %p160, %p161
      %s163 = ssub.s32 %s19, %s26
      %p164 = scmp.eq.s32.totalorder %s163, 0
      %s166 = sadd.s32 %s165, 1
      %s167 = scalar_select %p164, %s165, %s166
      %p170 = pneg %p164
      %p171 = scmp.eq.s32.totalorder %s19, 1
      %p172 = por %p170, %p171
      %p173 = scmp.ne.s32.totalorder %s165, %s168
      %p174 = scmp.eq.s32.totalorder %s19, 0
      %p175 = por %p173, %p174
      %p176 = scmp.ne.s32.totalorder %s165, %s168
      %p177 = scmp.eq.s32.totalorder %s24, 1
      %p178 = por %p176, %p177
      %p179 = scmp.ne.s32.totalorder %s168, %s169
      %p180 = scmp.eq.s32.totalorder %s24, 0
      %p181 = por %p179, %p180
      %p182 = scmp.ne.s32.totalorder %s168, %s169
      %p183 = scmp.eq.s32.totalorder %s25, 1
      %p184 = por %p182, %p183
      %p186 = scmp.ne.s32.totalorder %s169, %s185
      %p187 = scmp.eq.s32.totalorder %s25, 0
      %p188 = por %p186, %p187
      %p189 = scmp.le.s32.totalorder 1, %s19
      %p190 = scmp.lt.s32.totalorder %s19, 3
      %p191 = pnand %p189, %p190
      %p192 = pneg %p191
      // Predicated region
      $region9: #{tpu_custom_call.1} parent=5 // pred_check
        _
      $region10: #{tpu_custom_call.1} parent=5 // pred_check_branch
        %194 = sbr.rel (%p191) target = $region12
      $region11: #{tpu_custom_call.1} parent=5 // pred_region
        %s195 = ssub.s32 %s19, 1
        // Predicated region
        $region13: #{tpu_custom_call.1} parent=11 // pred_check
          %p196 = pneg %p66
        $region14: #{tpu_custom_call.1} parent=11 // pred_check_branch
          %198 = sbr.rel (%p196) target = $region16
        $region15: #{tpu_custom_call.1} parent=11 // pred_region
          _
        $region16: #{tpu_custom_call.1} parent=11 // pred_fallthru
          _
        // Predicated region
        $region17: #{tpu_custom_call.1} parent=11 // pred_check
          %p199 = pneg %p87
        $region18: #{tpu_custom_call.1} parent=11 // pred_check_branch
          %201 = sbr.rel (%p199) target = $region20
        $region19: #{tpu_custom_call.1} parent=11 // pred_region
          _
        $region20: #{tpu_custom_call.1} parent=11 // pred_fallthru
          _
        // Predicated region
        $region21: #{tpu_custom_call.1} parent=11 // pred_check
          %p202 = pneg %p108
        $region22: #{tpu_custom_call.1} parent=11 // pred_check_branch
          %204 = sbr.rel (%p202) target = $region24
        $region23: #{tpu_custom_call.1} parent=11 // pred_region
          _
        $region24: #{tpu_custom_call.1} parent=11 // pred_fallthru
          _
        // Predicated region
        $region25: #{tpu_custom_call.1} parent=11 // pred_check
          %p205 = pneg %p129
        $region26: #{tpu_custom_call.1} parent=11 // pred_check_branch
          %207 = sbr.rel (%p205) target = $region28
        $region27: #{tpu_custom_call.1} parent=11 // pred_region
          _
        $region28: #{tpu_custom_call.1} parent=11 // pred_fallthru
          _
      $region12: #{tpu_custom_call.1} parent=5 // pred_fallthru
        _
      %p208 = scmp.lt.s32.totalorder %s19, 2
      // Predicated region
      $region29: #{tpu_custom_call.1} parent=5 // pred_check
        %p209 = pneg %p208
      $region30: #{tpu_custom_call.1} parent=5 // pred_check_branch
        %211 = sbr.rel (%p209) target = $region32
      $region31: #{tpu_custom_call.1} parent=5 // pred_region
        // Predicated region
        $region33: #{tpu_custom_call.1} parent=31 // pred_check
          %p212 = pneg %p39
        $region34: #{tpu_custom_call.1} parent=31 // pred_check_branch
          %214 = sbr.rel (%p212) target = $region36
        $region35: #{tpu_custom_call.1} parent=31 // pred_region
          %s215 = smul.u32 32, %s19
          %p216 = scmp.lt.s32.totalorder %s215, 63
          %s217 = scalar_select %p216, %s215, 63
          %s218 = smul.addr %s217, 8
          %s219 = scalar_lea.vmem %s0, %s218
          %s220 = smul.u32 32, %s19
        $region36: #{tpu_custom_call.1} parent=31 // pred_fallthru
          _
      $region32: #{tpu_custom_call.1} parent=5 // pred_fallthru
        _
      %p221 = scmp.le.s32.totalorder 1, %s19
      %p222 = scmp.lt.s32.totalorder %s19, 3
      %p223 = pnand %p221, %p222
      %p224 = pneg %p223
      // Predicated region
      $region37: #{tpu_custom_call.1} parent=5 // pred_check
        _
      $region38: #{tpu_custom_call.1} parent=5 // pred_check_branch
        %226 = sbr.rel (%p223) target = $region40
      $region39: #{tpu_custom_call.1} parent=5 // pred_region
        %s227 = ssub.s32 %s19, 1
        %s228 = smul.u32 32, %s24
        %p229 = scmp.lt.s32.totalorder %s228, 63
        %s230 = scalar_select %p229, %s228, 63
        %s231 = smul.addr %s230, 8
        %s232 = scalar_lea.vmem %s0, %s231
        %p233 = pneg %p45
        %p234 = pneg %p42
        %p235 = pneg %p66
        %p236 = pneg %p63
        %p237 = pneg %p87
        %p238 = pneg %p84
        %p239 = pneg %p108
        %p240 = pneg %p105
        %p241 = pneg %p129
        %p242 = pneg %p126
        %p243 = pneg %p155
        %p244 = pneg %p152
        %s245 = sand.u32 %s142, 1
        %s246 = scalar_lea.sflag [#allocation3], %s245
        %s247 = sand.u32 %s142, 1
        %s248 = smul.addr %s247, 256
        %s249 = scalar_lea.vmem [#allocation2], %s248
        %p250 = pneg %p181
        %p251 = pneg %p178
        %s252 = sand.u32 %s168, 1
        %s253 = scalar_lea.sflag [#allocation5], %s252
        %s254 = sand.u32 %s168, 1
        %s255 = smul.addr %s254, 256
        %s256 = scalar_lea.vmem [#allocation4], %s255
        %s257 = smul.u32 32, %s24
        %p258 = scmp.lt.s32.totalorder %s257, 63
        %s259 = scalar_select %p258, %s257, 63
        %s260 = smul.addr %s259, 8
        %s261 = scalar_lea.vmem %s0, %s260
        %s262 = smul.u32 32, %s24
        %s263 = smul.u32 32, %s24
        %s264 = smul.u32 32, %s24
        %v265 = vld [vmem:[%s261] sm:$0xff]
        %v266 = vld [vmem:[%s261 + $0x8] sm:$0xff]
        %v267 = vld [vmem:[%s261 + $0x10] sm:$0xff]
        %v268 = vld [vmem:[%s261 + $0x18] sm:$0xff]
        %v269 = vld [vmem:[%s261 + $0x20] sm:$0xff]
        %v270 = vld [vmem:[%s261 + $0x28] sm:$0xff]
        %v271 = vld [vmem:[%s261 + $0x30] sm:$0xff]
        %v272 = vld [vmem:[%s261 + $0x38] sm:$0xff]
        %v273 = vld [vmem:[%s261 + $0x40] sm:$0xff]
        %v274 = vld [vmem:[%s261 + $0x48] sm:$0xff]
        %v275 = vld [vmem:[%s261 + $0x50] sm:$0xff]
        %v276 = vld [vmem:[%s261 + $0x58] sm:$0xff]
        %v277 = vld [vmem:[%s261 + $0x60] sm:$0xff]
        %v278 = vld [vmem:[%s261 + $0x68] sm:$0xff]
        %v279 = vld [vmem:[%s261 + $0x70] sm:$0xff]
        %v280 = vld [vmem:[%s261 + $0x78] sm:$0xff]
        %v281 = vld [vmem:[%s261 + $0x80] sm:$0xff]
        %v282 = vld [vmem:[%s261 + $0x88] sm:$0xff]
        %v283 = vld [vmem:[%s261 + $0x90] sm:$0xff]
        %v284 = vld [vmem:[%s261 + $0x98] sm:$0xff]
        %v285 = vld [vmem:[%s261 + $0xa0] sm:$0xff]
        %v286 = vld [vmem:[%s261 + $0xa8] sm:$0xff]
        %v287 = vld [vmem:[%s261 + $0xb0] sm:$0xff]
        %v288 = vld [vmem:[%s261 + $0xb8] sm:$0xff]
        %v289 = vld [vmem:[%s261 + $0xc0] sm:$0xff]
        %v290 = vld [vmem:[%s261 + $0xc8] sm:$0xff]
        %v291 = vld [vmem:[%s261 + $0xd0] sm:$0xff]
        %v292 = vld [vmem:[%s261 + $0xd8] sm:$0xff]
        %v293 = vld [vmem:[%s261 + $0xe0] sm:$0xff]
        %v294 = vld [vmem:[%s261 + $0xe8] sm:$0xff]
        %v295 = vld [vmem:[%s261 + $0xf0] sm:$0xff]
        %v296 = vld [vmem:[%s261 + $0xf8] sm:$0xff]
        %v297 = vld [vmem:[%s1] sm:$0xff]
        %v298 = vld [vmem:[%s1 + $0x8] sm:$0xff]
        %v299 = vld [vmem:[%s1 + $0x10] sm:$0xff]
        %v300 = vld [vmem:[%s1 + $0x18] sm:$0xff]
        %v301 = vld [vmem:[%s2] sm:$0x1]
        %v303 = vlaneseq
        %v304 = vshrl.u32 %v303, 7
        %v305 = vsub.s32 0, %v304
        %v306 = vrot.slane %v301, %v305
        %vm308 = vcmask 261120
        %v310 = vsel %vm308, %v265, 0
        %v313 = vsel %vm308, %v266, 0
        %v316 = vsel %vm308, %v267, 0
        %v319 = vsel %vm308, %v268, 0
        %v322 = vsel %vm308, %v269, 0
        %v325 = vsel %vm308, %v270, 0
        %v328 = vsel %vm308, %v271, 0
        %v331 = vsel %vm308, %v272, 0
        %v334 = vsel %vm308, %v273, 0
        %v337 = vsel %vm308, %v274, 0
        %v340 = vsel %vm308, %v275, 0
        %v343 = vsel %vm308, %v276, 0
        %v346 = vsel %vm308, %v277, 0
        %v349 = vsel %vm308, %v278, 0
        %v352 = vsel %vm308, %v279, 0
        %v355 = vsel %vm308, %v280, 0
        %v358 = vsel %vm308, %v281, 0
        %v361 = vsel %vm308, %v282, 0
        %v364 = vsel %vm308, %v283, 0
        %v367 = vsel %vm308, %v284, 0
        %v370 = vsel %vm308, %v285, 0
        %v373 = vsel %vm308, %v286, 0
        %v376 = vsel %vm308, %v287, 0
        %v379 = vsel %vm308, %v288, 0
        %v382 = vsel %vm308, %v289, 0
        %v385 = vsel %vm308, %v290, 0
        %v388 = vsel %vm308, %v291, 0
        %v391 = vsel %vm308, %v292, 0
        %v394 = vsel %vm308, %v293, 0
        %v397 = vsel %vm308, %v294, 0
        %v400 = vsel %vm308, %v295, 0
        %v403 = vsel %vm308, %v296, 0
        %405 = vmatprep.subr.mxu0 0.0
        %406 = vmatpush1.msra.mxu0 0.0
        %407 = vmatprep.subr.mxu0 0.0
        %408 = vmatpush1.msra.mxu0 0.0
        %409 = vmatprep.subr.mxu0 0.0
        %410 = vmatpush1.msra.mxu0 0.0
        %411 = vmatprep.subr.mxu0 0.0
        %412 = vmatpush1.msra.mxu0 0.0
        %413 = vmatprep.subr.mxu0 0.0
        %414 = vmatpush1.msra.mxu0 0.0
        %415 = vmatprep.subr.mxu0 0.0
        %416 = vmatpush1.msra.mxu0 0.0
        %417 = vmatprep.subr.mxu0 0.0
        %418 = vmatpush1.msra.mxu0 0.0
        %419 = vmatprep.subr.mxu0 0.0
        %420 = vmatpush1.msra.mxu0 0.0
        %421 = vmatprep.subr.mxu0 0.0
        %422 = vmatpush1.msra.mxu0 0.0
        %423 = vmatprep.subr.mxu0 0.0
        %424 = vmatpush1.msra.mxu0 0.0
        %425 = vmatprep.subr.mxu0 0.0
        %426 = vmatpush1.msra.mxu0 0.0
        %427 = vmatprep.subr.mxu0 0.0
        %428 = vmatpush1.msra.mxu0 0.0
        %429 = vmatprep.subr.mxu0 0.0
        %430 = vmatpush1.msra.mxu0 %v300
        %431 = vmatprep.subr.mxu0 0.0
        %432 = vmatpush1.msra.mxu0 %v299
        %433 = vmatprep.subr.mxu0 0.0
        %434 = vmatpush1.msra.mxu0 %v298
        %435 = vmatprep.subr.mxu0 0.0
        %436 = vmatpush1.msra.mxu0 %v297
        %437 = vmatprep.subr.mxu0 0.0
        %438 = vmatpush2.msra.mxu0 0.0
        %439 = vmatprep.subr.mxu0 0.0
        %440 = vmatpush2.msra.mxu0 0.0
        %441 = vmatprep.subr.mxu0 0.0
        %442 = vmatpush2.msra.mxu0 0.0
        %443 = vmatprep.subr.mxu0 0.0
        %444 = vmatpush2.msra.mxu0 0.0
        %445 = vmatprep.subr.mxu0 0.0
        %446 = vmatpush2.msra.mxu0 0.0
        %447 = vmatprep.subr.mxu0 0.0
        %448 = vmatpush2.msra.mxu0 0.0
        %449 = vmatprep.subr.mxu0 0.0
        %450 = vmatpush2.msra.mxu0 0.0
        %451 = vmatprep.subr.mxu0 0.0
        %452 = vmatpush2.msra.mxu0 0.0
        %453 = vmatprep.subr.mxu0 0.0
        %454 = vmatpush2.msra.mxu0 0.0
        %455 = vmatprep.subr.mxu0 0.0
        %456 = vmatpush2.msra.mxu0 0.0
        %457 = vmatprep.subr.mxu0 0.0
        %458 = vmatpush2.msra.mxu0 0.0
        %459 = vmatprep.subr.mxu0 0.0
        %460 = vmatpush2.msra.mxu0 0.0
        %461 = vmatprep.subr.mxu0 0.0
        %462 = vmatpush2.msra.mxu0 0.0
        %463 = vmatprep.subr.mxu0 0.0
        %464 = vmatpush2.msra.mxu0 0.0
        %465 = vmatprep.subr.mxu0 0.0
        %466 = vmatpush2.msra.mxu0 0.0
        %467 = vmatprep.subr.mxu0 0.0
        %468 = vmatpush2.msra.mxu0 0.0
        %469 = vmatprep.mubr.f32.mxu0 0.0
        %470 = vmatmul.mubr.f32.gmra.mxu0 %v310
        %v471 = vpop.f32.mrf.mxu0
        %v472 = vadd.f32 %v306, %v471
        %v473 = vpop.f32.mrf.mxu0
        %474 = vmatprep.mubr.f32.mxu0 0.0
        %475 = vmatmul.mubr.f32.gmra.mxu0 %v313
        %v476 = vpop.f32.mrf.mxu0
        %v477 = vadd.f32 %v306, %v476
        %v478 = vpop.f32.mrf.mxu0
        %479 = vmatprep.mubr.f32.mxu0 0.0
        %480 = vmatmul.mubr.f32.gmra.mxu0 %v316
        %v481 = vpop.f32.mrf.mxu0
        %v482 = vadd.f32 %v306, %v481
        %v483 = vpop.f32.mrf.mxu0
        %484 = vmatprep.mubr.f32.mxu0 0.0
        %485 = vmatmul.mubr.f32.gmra.mxu0 %v319
        %v486 = vpop.f32.mrf.mxu0
        %v487 = vadd.f32 %v306, %v486
        %v488 = vpop.f32.mrf.mxu0
        %489 = vmatprep.mubr.f32.mxu0 0.0
        %490 = vmatmul.mubr.f32.gmra.mxu0 %v322
        %v491 = vpop.f32.mrf.mxu0
        %v492 = vadd.f32 %v306, %v491
        %v493 = vpop.f32.mrf.mxu0
        %494 = vmatprep.mubr.f32.mxu0 0.0
        %495 = vmatmul.mubr.f32.gmra.mxu0 %v325
        %v496 = vpop.f32.mrf.mxu0
        %v497 = vadd.f32 %v306, %v496
        %v498 = vpop.f32.mrf.mxu0
        %499 = vmatprep.mubr.f32.mxu0 0.0
        %500 = vmatmul.mubr.f32.gmra.mxu0 %v328
        %v501 = vpop.f32.mrf.mxu0
        %v502 = vadd.f32 %v306, %v501
        %v503 = vpop.f32.mrf.mxu0
        %504 = vmatprep.mubr.f32.mxu0 0.0
        %505 = vmatmul.mubr.f32.gmra.mxu0 %v331
        %v506 = vpop.f32.mrf.mxu0
        %v507 = vadd.f32 %v306, %v506
        %v508 = vpop.f32.mrf.mxu0
        %509 = vmatprep.mubr.f32.mxu0 0.0
        %510 = vmatmul.mubr.f32.gmra.mxu0 %v334
        %v511 = vpop.f32.mrf.mxu0
        %v512 = vadd.f32 %v306, %v511
        %v513 = vpop.f32.mrf.mxu0
        %514 = vmatprep.mubr.f32.mxu0 0.0
        %515 = vmatmul.mubr.f32.gmra.mxu0 %v337
        %v516 = vpop.f32.mrf.mxu0
        %v517 = vadd.f32 %v306, %v516
        %v518 = vpop.f32.mrf.mxu0
        %519 = vmatprep.mubr.f32.mxu0 0.0
        %520 = vmatmul.mubr.f32.gmra.mxu0 %v340
        %v521 = vpop.f32.mrf.mxu0
        %v522 = vadd.f32 %v306, %v521
        %v523 = vpop.f32.mrf.mxu0
        %524 = vmatprep.mubr.f32.mxu0 0.0
        %525 = vmatmul.mubr.f32.gmra.mxu0 %v343
        %v526 = vpop.f32.mrf.mxu0
        %v527 = vadd.f32 %v306, %v526
        %v528 = vpop.f32.mrf.mxu0
        %529 = vmatprep.mubr.f32.mxu0 0.0
        %530 = vmatmul.mubr.f32.gmra.mxu0 %v346
        %v531 = vpop.f32.mrf.mxu0
        %v532 = vadd.f32 %v306, %v531
        %v533 = vpop.f32.mrf.mxu0
        %534 = vmatprep.mubr.f32.mxu0 0.0
        %535 = vmatmul.mubr.f32.gmra.mxu0 %v349
        %v536 = vpop.f32.mrf.mxu0
        %v537 = vadd.f32 %v306, %v536
        %v538 = vpop.f32.mrf.mxu0
        %539 = vmatprep.mubr.f32.mxu0 0.0
        %540 = vmatmul.mubr.f32.gmra.mxu0 %v352
        %v541 = vpop.f32.mrf.mxu0
        %v542 = vadd.f32 %v306, %v541
        %v543 = vpop.f32.mrf.mxu0
        %544 = vmatprep.mubr.f32.mxu0 0.0
        %545 = vmatmul.mubr.f32.gmra.mxu0 %v355
        %v546 = vpop.f32.mrf.mxu0
        %v547 = vadd.f32 %v306, %v546
        %v548 = vpop.f32.mrf.mxu0
        %549 = vmatprep.mubr.f32.mxu0 0.0
        %550 = vmatmul.mubr.f32.gmra.mxu0 %v358
        %v551 = vpop.f32.mrf.mxu0
        %v552 = vadd.f32 %v306, %v551
        %v553 = vpop.f32.mrf.mxu0
        %554 = vmatprep.mubr.f32.mxu0 0.0
        %555 = vmatmul.mubr.f32.gmra.mxu0 %v361
        %v556 = vpop.f32.mrf.mxu0
        %v557 = vadd.f32 %v306, %v556
        %v558 = vpop.f32.mrf.mxu0
        %559 = vmatprep.mubr.f32.mxu0 0.0
        %560 = vmatmul.mubr.f32.gmra.mxu0 %v364
        %v561 = vpop.f32.mrf.mxu0
        %v562 = vadd.f32 %v306, %v561
        %v563 = vpop.f32.mrf.mxu0
        %564 = vmatprep.mubr.f32.mxu0 0.0
        %565 = vmatmul.mubr.f32.gmra.mxu0 %v367
        %v566 = vpop.f32.mrf.mxu0
        %v567 = vadd.f32 %v306, %v566
        %v568 = vpop.f32.mrf.mxu0
        %569 = vmatprep.mubr.f32.mxu0 0.0
        %570 = vmatmul.mubr.f32.gmra.mxu0 %v370
        %v571 = vpop.f32.mrf.mxu0
        %v572 = vadd.f32 %v306, %v571
        %v573 = vpop.f32.mrf.mxu0
        %574 = vmatprep.mubr.f32.mxu0 0.0
        %575 = vmatmul.mubr.f32.gmra.mxu0 %v373
        %v576 = vpop.f32.mrf.mxu0
        %v577 = vadd.f32 %v306, %v576
        %v578 = vpop.f32.mrf.mxu0
        %579 = vmatprep.mubr.f32.mxu0 0.0
        %580 = vmatmul.mubr.f32.gmra.mxu0 %v376
        %v581 = vpop.f32.mrf.mxu0
        %v582 = vadd.f32 %v306, %v581
        %v583 = vpop.f32.mrf.mxu0
        %584 = vmatprep.mubr.f32.mxu0 0.0
        %585 = vmatmul.mubr.f32.gmra.mxu0 %v379
        %v586 = vpop.f32.mrf.mxu0
        %v587 = vadd.f32 %v306, %v586
        %v588 = vpop.f32.mrf.mxu0
        %589 = vmatprep.mubr.f32.mxu0 0.0
        %590 = vmatmul.mubr.f32.gmra.mxu0 %v382
        %v591 = vpop.f32.mrf.mxu0
        %v592 = vadd.f32 %v306, %v591
        %v593 = vpop.f32.mrf.mxu0
        %594 = vmatprep.mubr.f32.mxu0 0.0
        %595 = vmatmul.mubr.f32.gmra.mxu0 %v385
        %v596 = vpop.f32.mrf.mxu0
        %v597 = vadd.f32 %v306, %v596
        %v598 = vpop.f32.mrf.mxu0
        %599 = vmatprep.mubr.f32.mxu0 0.0
        %600 = vmatmul.mubr.f32.gmra.mxu0 %v388
        %v601 = vpop.f32.mrf.mxu0
        %v602 = vadd.f32 %v306, %v601
        %v603 = vpop.f32.mrf.mxu0
        %604 = vmatprep.mubr.f32.mxu0 0.0
        %605 = vmatmul.mubr.f32.gmra.mxu0 %v391
        %v606 = vpop.f32.mrf.mxu0
        %v607 = vadd.f32 %v306, %v606
        %v608 = vpop.f32.mrf.mxu0
        %609 = vmatprep.mubr.f32.mxu0 0.0
        %610 = vmatmul.mubr.f32.gmra.mxu0 %v394
        %v611 = vpop.f32.mrf.mxu0
        %v612 = vadd.f32 %v306, %v611
        %v613 = vpop.f32.mrf.mxu0
        %614 = vmatprep.mubr.f32.mxu0 0.0
        %615 = vmatmul.mubr.f32.gmra.mxu0 %v397
        %v616 = vpop.f32.mrf.mxu0
        %v617 = vadd.f32 %v306, %v616
        %v618 = vpop.f32.mrf.mxu0
        %619 = vmatprep.mubr.f32.mxu0 0.0
        %620 = vmatmul.mubr.f32.gmra.mxu0 %v400
        %v621 = vpop.f32.mrf.mxu0
        %v622 = vadd.f32 %v306, %v621
        %v623 = vpop.f32.mrf.mxu0
        %624 = vmatprep.mubr.f32.mxu0 0.0
        %625 = vmatmul.mubr.f32.gmra.mxu0 %v403
        %v626 = vpop.f32.mrf.mxu0
        %v627 = vadd.f32 %v306, %v626
        %v628 = vpop.f32.mrf.mxu0
        %629 = vdwg.mxu0
        %v630 = vmax.f32 %v472, 0.0
        %v631 = vmax.f32 %v477, 0.0
        %v632 = vmax.f32 %v482, 0.0
        %v633 = vmax.f32 %v487, 0.0
        %v634 = vmax.f32 %v492, 0.0
        %v635 = vmax.f32 %v497, 0.0
        %v636 = vmax.f32 %v502, 0.0
        %v637 = vmax.f32 %v507, 0.0
        %v638 = vmax.f32 %v512, 0.0
        %v639 = vmax.f32 %v517, 0.0
        %v640 = vmax.f32 %v522, 0.0
        %v641 = vmax.f32 %v527, 0.0
        %v642 = vmax.f32 %v532, 0.0
        %v643 = vmax.f32 %v537, 0.0
        %v644 = vmax.f32 %v542, 0.0
        %v645 = vmax.f32 %v547, 0.0
        %v646 = vmax.f32 %v552, 0.0
        %v647 = vmax.f32 %v557, 0.0
        %v648 = vmax.f32 %v562, 0.0
        %v649 = vmax.f32 %v567, 0.0
        %v650 = vmax.f32 %v572, 0.0
        %v651 = vmax.f32 %v577, 0.0
        %v652 = vmax.f32 %v582, 0.0
        %v653 = vmax.f32 %v587, 0.0
        %v654 = vmax.f32 %v592, 0.0
        %v655 = vmax.f32 %v597, 0.0
        %v656 = vmax.f32 %v602, 0.0
        %v657 = vmax.f32 %v607, 0.0
        %v658 = vmax.f32 %v612, 0.0
        %v659 = vmax.f32 %v617, 0.0
        %v660 = vmax.f32 %v622, 0.0
        %v661 = vmax.f32 %v627, 0.0
        %vm662 = vcmask 523264
        %663 = vst.msk [vmem:[%s249] sm:$0xff] %vm662, %v472
        %664 = vst.msk [vmem:[%s249 + $0x8] sm:$0xff] %vm662, %v477
        %665 = vst.msk [vmem:[%s249 + $0x10] sm:$0xff] %vm662, %v482
        %666 = vst.msk [vmem:[%s249 + $0x18] sm:$0xff] %vm662, %v487
        %667 = vst.msk [vmem:[%s249 + $0x20] sm:$0xff] %vm662, %v492
        %668 = vst.msk [vmem:[%s249 + $0x28] sm:$0xff] %vm662, %v497
        %669 = vst.msk [vmem:[%s249 + $0x30] sm:$0xff] %vm662, %v502
        %670 = vst.msk [vmem:[%s249 + $0x38] sm:$0xff] %vm662, %v507
        %671 = vst.msk [vmem:[%s249 + $0x40] sm:$0xff] %vm662, %v512
        %672 = vst.msk [vmem:[%s249 + $0x48] sm:$0xff] %vm662, %v517
        %673 = vst.msk [vmem:[%s249 + $0x50] sm:$0xff] %vm662, %v522
        %674 = vst.msk [vmem:[%s249 + $0x58] sm:$0xff] %vm662, %v527
        %675 = vst.msk [vmem:[%s249 + $0x60] sm:$0xff] %vm662, %v532
        %676 = vst.msk [vmem:[%s249 + $0x68] sm:$0xff] %vm662, %v537
        %677 = vst.msk [vmem:[%s249 + $0x70] sm:$0xff] %vm662, %v542
        %678 = vst.msk [vmem:[%s249 + $0x78] sm:$0xff] %vm662, %v547
        %679 = vst.msk [vmem:[%s249 + $0x80] sm:$0xff] %vm662, %v552
        %680 = vst.msk [vmem:[%s249 + $0x88] sm:$0xff] %vm662, %v557
        %681 = vst.msk [vmem:[%s249 + $0x90] sm:$0xff] %vm662, %v562
        %682 = vst.msk [vmem:[%s249 + $0x98] sm:$0xff] %vm662, %v567
        %683 = vst.msk [vmem:[%s249 + $0xa0] sm:$0xff] %vm662, %v572
        %684 = vst.msk [vmem:[%s249 + $0xa8] sm:$0xff] %vm662, %v577
        %685 = vst.msk [vmem:[%s249 + $0xb0] sm:$0xff] %vm662, %v582
        %686 = vst.msk [vmem:[%s249 + $0xb8] sm:$0xff] %vm662, %v587
        %687 = vst.msk [vmem:[%s249 + $0xc0] sm:$0xff] %vm662, %v592
        %688 = vst.msk [vmem:[%s249 + $0xc8] sm:$0xff] %vm662, %v597
        %689 = vst.msk [vmem:[%s249 + $0xd0] sm:$0xff] %vm662, %v602
        %690 = vst.msk [vmem:[%s249 + $0xd8] sm:$0xff] %vm662, %v607
        %691 = vst.msk [vmem:[%s249 + $0xe0] sm:$0xff] %vm662, %v612
        %692 = vst.msk [vmem:[%s249 + $0xe8] sm:$0xff] %vm662, %v617
        %693 = vst.msk [vmem:[%s249 + $0xf0] sm:$0xff] %vm662, %v622
        %694 = vst.msk [vmem:[%s249 + $0xf8] sm:$0xff] %vm662, %v627
        %727 = vrot.lane.b32.xlu0 %v630, 64
        %v728 = vpop.permute.xlu0 %727
        %729 = vrot.lane.b32.xlu0 %v631, 64
        %v730 = vpop.permute.xlu0 %729
        %731 = vrot.lane.b32.xlu0 %v632, 64
        %v732 = vpop.permute.xlu0 %731
        %733 = vrot.lane.b32.xlu0 %v633, 64
        %v734 = vpop.permute.xlu0 %733
        %735 = vrot.lane.b32.xlu0 %v634, 64
        %v736 = vpop.permute.xlu0 %735
        %737 = vrot.lane.b32.xlu0 %v635, 64
        %v738 = vpop.permute.xlu0 %737
        %739 = vrot.lane.b32.xlu0 %v636, 64
        %v740 = vpop.permute.xlu0 %739
        %741 = vrot.lane.b32.xlu0 %v637, 64
        %v742 = vpop.permute.xlu0 %741
        %743 = vrot.lane.b32.xlu0 %v638, 64
        %v744 = vpop.permute.xlu0 %743
        %745 = vrot.lane.b32.xlu0 %v639, 64
        %v746 = vpop.permute.xlu0 %745
        %747 = vrot.lane.b32.xlu0 %v640, 64
        %v748 = vpop.permute.xlu0 %747
        %749 = vrot.lane.b32.xlu0 %v641, 64
        %v750 = vpop.permute.xlu0 %749
        %751 = vrot.lane.b32.xlu0 %v642, 64
        %v752 = vpop.permute.xlu0 %751
        %753 = vrot.lane.b32.xlu0 %v643, 64
        %v754 = vpop.permute.xlu0 %753
        %755 = vrot.lane.b32.xlu0 %v644, 64
        %v756 = vpop.permute.xlu0 %755
        %757 = vrot.lane.b32.xlu0 %v645, 64
        %v758 = vpop.permute.xlu0 %757
        %759 = vrot.lane.b32.xlu0 %v646, 64
        %v760 = vpop.permute.xlu0 %759
        %761 = vrot.lane.b32.xlu0 %v647, 64
        %v762 = vpop.permute.xlu0 %761
        %763 = vrot.lane.b32.xlu0 %v648, 64
        %v764 = vpop.permute.xlu0 %763
        %765 = vrot.lane.b32.xlu0 %v649, 64
        %v766 = vpop.permute.xlu0 %765
        %767 = vrot.lane.b32.xlu0 %v650, 64
        %v768 = vpop.permute.xlu0 %767
        %769 = vrot.lane.b32.xlu0 %v651, 64
        %v770 = vpop.permute.xlu0 %769
        %771 = vrot.lane.b32.xlu0 %v652, 64
        %v772 = vpop.permute.xlu0 %771
        %773 = vrot.lane.b32.xlu0 %v653, 64
        %v774 = vpop.permute.xlu0 %773
        %775 = vrot.lane.b32.xlu0 %v654, 64
        %v776 = vpop.permute.xlu0 %775
        %777 = vrot.lane.b32.xlu0 %v655, 64
        %v778 = vpop.permute.xlu0 %777
        %779 = vrot.lane.b32.xlu0 %v656, 64
        %v780 = vpop.permute.xlu0 %779
        %781 = vrot.lane.b32.xlu0 %v657, 64
        %v782 = vpop.permute.xlu0 %781
        %783 = vrot.lane.b32.xlu0 %v658, 64
        %v784 = vpop.permute.xlu0 %783
        %785 = vrot.lane.b32.xlu0 %v659, 64
        %v786 = vpop.permute.xlu0 %785
        %787 = vrot.lane.b32.xlu0 %v660, 64
        %v788 = vpop.permute.xlu0 %787
        %789 = vrot.lane.b32.xlu0 %v661, 64
        %v790 = vpop.permute.xlu0 %789
        %vm823 = vcmask 1048064
        %824 = vst.msk [vmem:[%s249] sm:$0xff] %vm823, %v728
        %825 = vst.msk [vmem:[%s249 + $0x8] sm:$0xff] %vm823, %v730
        %826 = vst.msk [vmem:[%s249 + $0x10] sm:$0xff] %vm823, %v732
        %827 = vst.msk [vmem:[%s249 + $0x18] sm:$0xff] %vm823, %v734
        %828 = vst.msk [vmem:[%s249 + $0x20] sm:$0xff] %vm823, %v736
        %829 = vst.msk [vmem:[%s249 + $0x28] sm:$0xff] %vm823, %v738
        %830 = vst.msk [vmem:[%s249 + $0x30] sm:$0xff] %vm823, %v740
        %831 = vst.msk [vmem:[%s249 + $0x38] sm:$0xff] %vm823, %v742
        %832 = vst.msk [vmem:[%s249 + $0x40] sm:$0xff] %vm823, %v744
        %833 = vst.msk [vmem:[%s249 + $0x48] sm:$0xff] %vm823, %v746
        %834 = vst.msk [vmem:[%s249 + $0x50] sm:$0xff] %vm823, %v748
        %835 = vst.msk [vmem:[%s249 + $0x58] sm:$0xff] %vm823, %v750
        %836 = vst.msk [vmem:[%s249 + $0x60] sm:$0xff] %vm823, %v752
        %837 = vst.msk [vmem:[%s249 + $0x68] sm:$0xff] %vm823, %v754
        %838 = vst.msk [vmem:[%s249 + $0x70] sm:$0xff] %vm823, %v756
        %839 = vst.msk [vmem:[%s249 + $0x78] sm:$0xff] %vm823, %v758
        %840 = vst.msk [vmem:[%s249 + $0x80] sm:$0xff] %vm823, %v760
        %841 = vst.msk [vmem:[%s249 + $0x88] sm:$0xff] %vm823, %v762
        %842 = vst.msk [vmem:[%s249 + $0x90] sm:$0xff] %vm823, %v764
        %843 = vst.msk [vmem:[%s249 + $0x98] sm:$0xff] %vm823, %v766
        %844 = vst.msk [vmem:[%s249 + $0xa0] sm:$0xff] %vm823, %v768
        %845 = vst.msk [vmem:[%s249 + $0xa8] sm:$0xff] %vm823, %v770
        %846 = vst.msk [vmem:[%s249 + $0xb0] sm:$0xff] %vm823, %v772
        %847 = vst.msk [vmem:[%s249 + $0xb8] sm:$0xff] %vm823, %v774
        %848 = vst.msk [vmem:[%s249 + $0xc0] sm:$0xff] %vm823, %v776
        %849 = vst.msk [vmem:[%s249 + $0xc8] sm:$0xff] %vm823, %v778
        %850 = vst.msk [vmem:[%s249 + $0xd0] sm:$0xff] %vm823, %v780
        %851 = vst.msk [vmem:[%s249 + $0xd8] sm:$0xff] %vm823, %v782
        %852 = vst.msk [vmem:[%s249 + $0xe0] sm:$0xff] %vm823, %v784
        %853 = vst.msk [vmem:[%s249 + $0xe8] sm:$0xff] %vm823, %v786
        %854 = vst.msk [vmem:[%s249 + $0xf0] sm:$0xff] %vm823, %v788
        %855 = vst.msk [vmem:[%s249 + $0xf8] sm:$0xff] %vm823, %v790
        %v856 = vld [vmem:[%s3] sm:$0xff]
        %v857 = vld [vmem:[%s3 + $0x8] sm:$0xff]
        %v858 = vld [vmem:[%s3 + $0x10] sm:$0xff]
        %v859 = vld [vmem:[%s3 + $0x18] sm:$0xff]
        %v860 = vld [vmem:[%s3 + $0x20] sm:$0xff]
        %v861 = vld [vmem:[%s3 + $0x28] sm:$0xff]
        %v862 = vld [vmem:[%s3 + $0x30] sm:$0xff]
        %v863 = vld [vmem:[%s3 + $0x38] sm:$0xff]
        %v864 = vld [vmem:[%s4] sm:$0x1]
        %v866 = vlaneseq
        %v867 = vshrl.u32 %v866, 7
        %v868 = vsub.s32 0, %v867
        %v869 = vrot.slane %v864, %v868
        %v871 = vsel %vm662, %v630, 0
        %v873 = vsel %vm662, %v631, 0
        %v875 = vsel %vm662, %v632, 0
        %v877 = vsel %vm662, %v633, 0
        %v879 = vsel %vm662, %v634, 0
        %v881 = vsel %vm662, %v635, 0
        %v883 = vsel %vm662, %v636, 0
        %v885 = vsel %vm662, %v637, 0
        %v887 = vsel %vm662, %v638, 0
        %v889 = vsel %vm662, %v639, 0
        %v891 = vsel %vm662, %v640, 0
        %v893 = vsel %vm662, %v641, 0
        %v895 = vsel %vm662, %v642, 0
        %v897 = vsel %vm662, %v643, 0
        %v899 = vsel %vm662, %v644, 0
        %v901 = vsel %vm662, %v645, 0
        %v903 = vsel %vm662, %v646, 0
        %v905 = vsel %vm662, %v647, 0
        %v907 = vsel %vm662, %v648, 0
        %v909 = vsel %vm662, %v649, 0
        %v911 = vsel %vm662, %v650, 0
        %v913 = vsel %vm662, %v651, 0
        %v915 = vsel %vm662, %v652, 0
        %v917 = vsel %vm662, %v653, 0
        %v919 = vsel %vm662, %v654, 0
        %v921 = vsel %vm662, %v655, 0
        %v923 = vsel %vm662, %v656, 0
        %v925 = vsel %vm662, %v657, 0
        %v927 = vsel %vm662, %v658, 0
        %v929 = vsel %vm662, %v659, 0
        %v931 = vsel %vm662, %v660, 0
        %v933 = vsel %vm662, %v661, 0
        %935 = vmatprep.subr.mxu0 0.0
        %936 = vmatpush1.msra.mxu0 0.0
        %937 = vmatprep.subr.mxu0 0.0
        %938 = vmatpush1.msra.mxu0 0.0
        %939 = vmatprep.subr.mxu0 0.0
        %940 = vmatpush1.msra.mxu0 0.0
        %941 = vmatprep.subr.mxu0 0.0
        %942 = vmatpush1.msra.mxu0 0.0
        %943 = vmatprep.subr.mxu0 0.0
        %944 = vmatpush1.msra.mxu0 0.0
        %945 = vmatprep.subr.mxu0 0.0
        %946 = vmatpush1.msra.mxu0 0.0
        %947 = vmatprep.subr.mxu0 0.0
        %948 = vmatpush1.msra.mxu0 0.0
        %949 = vmatprep.subr.mxu0 0.0
        %950 = vmatpush1.msra.mxu0 0.0
        %951 = vmatprep.subr.mxu0 0.0
        %952 = vmatpush1.msra.mxu0 %v863
        %953 = vmatprep.subr.mxu0 0.0
        %954 = vmatpush1.msra.mxu0 %v862
        %955 = vmatprep.subr.mxu0 0.0
        %956 = vmatpush1.msra.mxu0 %v861
        %957 = vmatprep.subr.mxu0 0.0
        %958 = vmatpush1.msra.mxu0 %v860
        %959 = vmatprep.subr.mxu0 0.0
        %960 = vmatpush1.msra.mxu0 %v859
        %961 = vmatprep.subr.mxu0 0.0
        %962 = vmatpush1.msra.mxu0 %v858
        %963 = vmatprep.subr.mxu0 0.0
        %964 = vmatpush1.msra.mxu0 %v857
        %965 = vmatprep.subr.mxu0 0.0
        %966 = vmatpush1.msra.mxu0 %v856
        %967 = vmatprep.subr.mxu0 0.0
        %968 = vmatpush2.msra.mxu0 0.0
        %969 = vmatprep.subr.mxu0 0.0
        %970 = vmatpush2.msra.mxu0 0.0
        %971 = vmatprep.subr.mxu0 0.0
        %972 = vmatpush2.msra.mxu0 0.0
        %973 = vmatprep.subr.mxu0 0.0
        %974 = vmatpush2.msra.mxu0 0.0
        %975 = vmatprep.subr.mxu0 0.0
        %976 = vmatpush2.msra.mxu0 0.0
        %977 = vmatprep.subr.mxu0 0.0
        %978 = vmatpush2.msra.mxu0 0.0
        %979 = vmatprep.subr.mxu0 0.0
        %980 = vmatpush2.msra.mxu0 0.0
        %981 = vmatprep.subr.mxu0 0.0
        %982 = vmatpush2.msra.mxu0 0.0
        %983 = vmatprep.subr.mxu0 0.0
        %984 = vmatpush2.msra.mxu0 0.0
        %985 = vmatprep.subr.mxu0 0.0
        %986 = vmatpush2.msra.mxu0 0.0
        %987 = vmatprep.subr.mxu0 0.0
        %988 = vmatpush2.msra.mxu0 0.0
        %989 = vmatprep.subr.mxu0 0.0
        %990 = vmatpush2.msra.mxu0 0.0
        %991 = vmatprep.subr.mxu0 0.0
        %992 = vmatpush2.msra.mxu0 0.0
        %993 = vmatprep.subr.mxu0 0.0
        %994 = vmatpush2.msra.mxu0 0.0
        %995 = vmatprep.subr.mxu0 0.0
        %996 = vmatpush2.msra.mxu0 0.0
        %997 = vmatprep.subr.mxu0 0.0
        %998 = vmatpush2.msra.mxu0 0.0
        %999 = vmatprep.mubr.f32.mxu0 0.0
        %1000 = vmatmul.mubr.f32.gmra.mxu0 %v871
        %v1001 = vpop.f32.mrf.mxu0
        %v1002 = vadd.f32 %v869, %v1001
        %v1003 = vpop.f32.mrf.mxu0
        %1004 = vmatprep.mubr.f32.mxu0 0.0
        %1005 = vmatmul.mubr.f32.gmra.mxu0 %v873
        %v1006 = vpop.f32.mrf.mxu0
        %v1007 = vadd.f32 %v869, %v1006
        %v1008 = vpop.f32.mrf.mxu0
        %1009 = vmatprep.mubr.f32.mxu0 0.0
        %1010 = vmatmul.mubr.f32.gmra.mxu0 %v875
        %v1011 = vpop.f32.mrf.mxu0
        %v1012 = vadd.f32 %v869, %v1011
        %v1013 = vpop.f32.mrf.mxu0
        %1014 = vmatprep.mubr.f32.mxu0 0.0
        %1015 = vmatmul.mubr.f32.gmra.mxu0 %v877
        %v1016 = vpop.f32.mrf.mxu0
        %v1017 = vadd.f32 %v869, %v1016
        %v1018 = vpop.f32.mrf.mxu0
        %1019 = vmatprep.mubr.f32.mxu0 0.0
        %1020 = vmatmul.mubr.f32.gmra.mxu0 %v879
        %v1021 = vpop.f32.mrf.mxu0
        %v1022 = vadd.f32 %v869, %v1021
        %v1023 = vpop.f32.mrf.mxu0
        %1024 = vmatprep.mubr.f32.mxu0 0.0
        %1025 = vmatmul.mubr.f32.gmra.mxu0 %v881
        %v1026 = vpop.f32.mrf.mxu0
        %v1027 = vadd.f32 %v869, %v1026
        %v1028 = vpop.f32.mrf.mxu0
        %1029 = vmatprep.mubr.f32.mxu0 0.0
        %1030 = vmatmul.mubr.f32.gmra.mxu0 %v883
        %v1031 = vpop.f32.mrf.mxu0
        %v1032 = vadd.f32 %v869, %v1031
        %v1033 = vpop.f32.mrf.mxu0
        %1034 = vmatprep.mubr.f32.mxu0 0.0
        %1035 = vmatmul.mubr.f32.gmra.mxu0 %v885
        %v1036 = vpop.f32.mrf.mxu0
        %v1037 = vadd.f32 %v869, %v1036
        %v1038 = vpop.f32.mrf.mxu0
        %1039 = vmatprep.mubr.f32.mxu0 0.0
        %1040 = vmatmul.mubr.f32.gmra.mxu0 %v887
        %v1041 = vpop.f32.mrf.mxu0
        %v1042 = vadd.f32 %v869, %v1041
        %v1043 = vpop.f32.mrf.mxu0
        %1044 = vmatprep.mubr.f32.mxu0 0.0
        %1045 = vmatmul.mubr.f32.gmra.mxu0 %v889
        %v1046 = vpop.f32.mrf.mxu0
        %v1047 = vadd.f32 %v869, %v1046
        %v1048 = vpop.f32.mrf.mxu0
        %1049 = vmatprep.mubr.f32.mxu0 0.0
        %1050 = vmatmul.mubr.f32.gmra.mxu0 %v891
        %v1051 = vpop.f32.mrf.mxu0
        %v1052 = vadd.f32 %v869, %v1051
        %v1053 = vpop.f32.mrf.mxu0
        %1054 = vmatprep.mubr.f32.mxu0 0.0
        %1055 = vmatmul.mubr.f32.gmra.mxu0 %v893
        %v1056 = vpop.f32.mrf.mxu0
        %v1057 = vadd.f32 %v869, %v1056
        %v1058 = vpop.f32.mrf.mxu0
        %1059 = vmatprep.mubr.f32.mxu0 0.0
        %1060 = vmatmul.mubr.f32.gmra.mxu0 %v895
        %v1061 = vpop.f32.mrf.mxu0
        %v1062 = vadd.f32 %v869, %v1061
        %v1063 = vpop.f32.mrf.mxu0
        %1064 = vmatprep.mubr.f32.mxu0 0.0
        %1065 = vmatmul.mubr.f32.gmra.mxu0 %v897
        %v1066 = vpop.f32.mrf.mxu0
        %v1067 = vadd.f32 %v869, %v1066
        %v1068 = vpop.f32.mrf.mxu0
        %1069 = vmatprep.mubr.f32.mxu0 0.0
        %1070 = vmatmul.mubr.f32.gmra.mxu0 %v899
        %v1071 = vpop.f32.mrf.mxu0
        %v1072 = vadd.f32 %v869, %v1071
        %v1073 = vpop.f32.mrf.mxu0
        %1074 = vmatprep.mubr.f32.mxu0 0.0
        %1075 = vmatmul.mubr.f32.gmra.mxu0 %v901
        %v1076 = vpop.f32.mrf.mxu0
        %v1077 = vadd.f32 %v869, %v1076
        %v1078 = vpop.f32.mrf.mxu0
        %1079 = vmatprep.mubr.f32.mxu0 0.0
        %1080 = vmatmul.mubr.f32.gmra.mxu0 %v903
        %v1081 = vpop.f32.mrf.mxu0
        %v1082 = vadd.f32 %v869, %v1081
        %v1083 = vpop.f32.mrf.mxu0
        %1084 = vmatprep.mubr.f32.mxu0 0.0
        %1085 = vmatmul.mubr.f32.gmra.mxu0 %v905
        %v1086 = vpop.f32.mrf.mxu0
        %v1087 = vadd.f32 %v869, %v1086
        %v1088 = vpop.f32.mrf.mxu0
        %1089 = vmatprep.mubr.f32.mxu0 0.0
        %1090 = vmatmul.mubr.f32.gmra.mxu0 %v907
        %v1091 = vpop.f32.mrf.mxu0
        %v1092 = vadd.f32 %v869, %v1091
        %v1093 = vpop.f32.mrf.mxu0
        %1094 = vmatprep.mubr.f32.mxu0 0.0
        %1095 = vmatmul.mubr.f32.gmra.mxu0 %v909
        %v1096 = vpop.f32.mrf.mxu0
        %v1097 = vadd.f32 %v869, %v1096
        %v1098 = vpop.f32.mrf.mxu0
        %1099 = vmatprep.mubr.f32.mxu0 0.0
        %1100 = vmatmul.mubr.f32.gmra.mxu0 %v911
        %v1101 = vpop.f32.mrf.mxu0
        %v1102 = vadd.f32 %v869, %v1101
        %v1103 = vpop.f32.mrf.mxu0
        %1104 = vmatprep.mubr.f32.mxu0 0.0
        %1105 = vmatmul.mubr.f32.gmra.mxu0 %v913
        %v1106 = vpop.f32.mrf.mxu0
        %v1107 = vadd.f32 %v869, %v1106
        %v1108 = vpop.f32.mrf.mxu0
        %1109 = vmatprep.mubr.f32.mxu0 0.0
        %1110 = vmatmul.mubr.f32.gmra.mxu0 %v915
        %v1111 = vpop.f32.mrf.mxu0
        %v1112 = vadd.f32 %v869, %v1111
        %v1113 = vpop.f32.mrf.mxu0
        %1114 = vmatprep.mubr.f32.mxu0 0.0
        %1115 = vmatmul.mubr.f32.gmra.mxu0 %v917
        %v1116 = vpop.f32.mrf.mxu0
        %v1117 = vadd.f32 %v869, %v1116
        %v1118 = vpop.f32.mrf.mxu0
        %1119 = vmatprep.mubr.f32.mxu0 0.0
        %1120 = vmatmul.mubr.f32.gmra.mxu0 %v919
        %v1121 = vpop.f32.mrf.mxu0
        %v1122 = vadd.f32 %v869, %v1121
        %v1123 = vpop.f32.mrf.mxu0
        %1124 = vmatprep.mubr.f32.mxu0 0.0
        %1125 = vmatmul.mubr.f32.gmra.mxu0 %v921
        %v1126 = vpop.f32.mrf.mxu0
        %v1127 = vadd.f32 %v869, %v1126
        %v1128 = vpop.f32.mrf.mxu0
        %1129 = vmatprep.mubr.f32.mxu0 0.0
        %1130 = vmatmul.mubr.f32.gmra.mxu0 %v923
        %v1131 = vpop.f32.mrf.mxu0
        %v1132 = vadd.f32 %v869, %v1131
        %v1133 = vpop.f32.mrf.mxu0
        %1134 = vmatprep.mubr.f32.mxu0 0.0
        %1135 = vmatmul.mubr.f32.gmra.mxu0 %v925
        %v1136 = vpop.f32.mrf.mxu0
        %v1137 = vadd.f32 %v869, %v1136
        %v1138 = vpop.f32.mrf.mxu0
        %1139 = vmatprep.mubr.f32.mxu0 0.0
        %1140 = vmatmul.mubr.f32.gmra.mxu0 %v927
        %v1141 = vpop.f32.mrf.mxu0
        %v1142 = vadd.f32 %v869, %v1141
        %v1143 = vpop.f32.mrf.mxu0
        %1144 = vmatprep.mubr.f32.mxu0 0.0
        %1145 = vmatmul.mubr.f32.gmra.mxu0 %v929
        %v1146 = vpop.f32.mrf.mxu0
        %v1147 = vadd.f32 %v869, %v1146
        %v1148 = vpop.f32.mrf.mxu0
        %1149 = vmatprep.mubr.f32.mxu0 0.0
        %1150 = vmatmul.mubr.f32.gmra.mxu0 %v931
        %v1151 = vpop.f32.mrf.mxu0
        %v1152 = vadd.f32 %v869, %v1151
        %v1153 = vpop.f32.mrf.mxu0
        %1154 = vmatprep.mubr.f32.mxu0 0.0
        %1155 = vmatmul.mubr.f32.gmra.mxu0 %v933
        %v1156 = vpop.f32.mrf.mxu0
        %v1157 = vadd.f32 %v869, %v1156
        %v1158 = vpop.f32.mrf.mxu0
        %1159 = vdwg.mxu0
        %1160 = vst [vmem:[%s256] sm:$0xff] %v1002
        %1161 = vst [vmem:[%s256 + $0x8] sm:$0xff] %v1007
        %1162 = vst [vmem:[%s256 + $0x10] sm:$0xff] %v1012
        %1163 = vst [vmem:[%s256 + $0x18] sm:$0xff] %v1017
        %1164 = vst [vmem:[%s256 + $0x20] sm:$0xff] %v1022
        %1165 = vst [vmem:[%s256 + $0x28] sm:$0xff] %v1027
        %1166 = vst [vmem:[%s256 + $0x30] sm:$0xff] %v1032
        %1167 = vst [vmem:[%s256 + $0x38] sm:$0xff] %v1037
        %1168 = vst [vmem:[%s256 + $0x40] sm:$0xff] %v1042
        %1169 = vst [vmem:[%s256 + $0x48] sm:$0xff] %v1047
        %1170 = vst [vmem:[%s256 + $0x50] sm:$0xff] %v1052
        %1171 = vst [vmem:[%s256 + $0x58] sm:$0xff] %v1057
        %1172 = vst [vmem:[%s256 + $0x60] sm:$0xff] %v1062
        %1173 = vst [vmem:[%s256 + $0x68] sm:$0xff] %v1067
        %1174 = vst [vmem:[%s256 + $0x70] sm:$0xff] %v1072
        %1175 = vst [vmem:[%s256 + $0x78] sm:$0xff] %v1077
        %1176 = vst [vmem:[%s256 + $0x80] sm:$0xff] %v1082
        %1177 = vst [vmem:[%s256 + $0x88] sm:$0xff] %v1087
        %1178 = vst [vmem:[%s256 + $0x90] sm:$0xff] %v1092
        %1179 = vst [vmem:[%s256 + $0x98] sm:$0xff] %v1097
        %1180 = vst [vmem:[%s256 + $0xa0] sm:$0xff] %v1102
        %1181 = vst [vmem:[%s256 + $0xa8] sm:$0xff] %v1107
        %1182 = vst [vmem:[%s256 + $0xb0] sm:$0xff] %v1112
        %1183 = vst [vmem:[%s256 + $0xb8] sm:$0xff] %v1117
        %1184 = vst [vmem:[%s256 + $0xc0] sm:$0xff] %v1122
        %1185 = vst [vmem:[%s256 + $0xc8] sm:$0xff] %v1127
        %1186 = vst [vmem:[%s256 + $0xd0] sm:$0xff] %v1132
        %1187 = vst [vmem:[%s256 + $0xd8] sm:$0xff] %v1137
        %1188 = vst [vmem:[%s256 + $0xe0] sm:$0xff] %v1142
        %1189 = vst [vmem:[%s256 + $0xe8] sm:$0xff] %v1147
        %1190 = vst [vmem:[%s256 + $0xf0] sm:$0xff] %v1152
        %1191 = vst [vmem:[%s256 + $0xf8] sm:$0xff] %v1157
        %s1192 = sand.u32 %s142, 1
        %s1193 = scalar_lea.sflag [#allocation3], %s1192
        %s1194 = sand.u32 %s142, 1
        %s1195 = smul.addr %s1194, 256
        %s1196 = scalar_lea.vmem [#allocation2], %s1195
        %s1197 = sand.u32 %s168, 1
        %s1198 = scalar_lea.sflag [#allocation5], %s1197
        %s1199 = sand.u32 %s168, 1
        %s1200 = smul.addr %s1199, 256
        %s1201 = scalar_lea.vmem [#allocation4], %s1200
        // Predicated region
        $region41: #{tpu_custom_call.1} parent=39 // pred_check
          %p1202 = pneg %p152
        $region42: #{tpu_custom_call.1} parent=39 // pred_check_branch
          %1204 = sbr.rel (%p1202) target = $region44
        $region43: #{tpu_custom_call.1} parent=39 // pred_region
          %s1205 = smul.u32 32, %s24
          %s1207 = ssub.s32 4096, 4096
          %1208 = vsyncadd %s1193, %s1207
          %s1209 = smul.addr %s1205, 128
          %s1210 = scalar_lea.hbm %s5, %s1209
          %s1211 = sshll.u32 %s1196, 4
          %s1212 = int_to_ptr.vmem [resolvable:$true] %s1211
          %1217 = dma.vmem_to_hbm [thread:$0]  %s1212, 4096, %s1210, %s1193, 128, 128, 8
        $region44: #{tpu_custom_call.1} parent=39 // pred_fallthru
          _
        // Predicated region
        $region45: #{tpu_custom_call.1} parent=39 // pred_check
          %p1218 = pneg %p178
        $region46: #{tpu_custom_call.1} parent=39 // pred_check_branch
          %1220 = sbr.rel (%p1218) target = $region48
        $region47: #{tpu_custom_call.1} parent=39 // pred_region
          %s1221 = smul.u32 32, %s24
          %s1223 = ssub.s32 4096, 4096
          %1224 = vsyncadd %s1198, %s1223
          %s1225 = smul.addr %s1221, 128
          %s1226 = scalar_lea.hbm %s6, %s1225
          %s1227 = sshll.u32 %s1201, 4
          %s1228 = int_to_ptr.vmem [resolvable:$true] %s1227
          %1233 = dma.vmem_to_hbm [thread:$0]  %s1228, 4096, %s1226, %s1198, 128, 128, 8
        $region48: #{tpu_custom_call.1} parent=39 // pred_fallthru
          _
      $region40: #{tpu_custom_call.1} parent=5 // pred_fallthru
        _
      %p1234 = scmp.le.s32.totalorder 2, %s19
      // Predicated region
      $region49: #{tpu_custom_call.1} parent=5 // pred_check
        %p1235 = pneg %p1234
      $region50: #{tpu_custom_call.1} parent=5 // pred_check_branch
        %1237 = sbr.rel (%p1235) target = $region52
      $region51: #{tpu_custom_call.1} parent=5 // pred_region
        %s1238 = ssub.s32 %s19, 2
        // Predicated region
        $region53: #{tpu_custom_call.1} parent=51 // pred_check
          %p1239 = pneg %p158
        $region54: #{tpu_custom_call.1} parent=51 // pred_check_branch
          %1241 = sbr.rel (%p1239) target = $region56
        $region55: #{tpu_custom_call.1} parent=51 // pred_region
          %s1242 = sand.u32 %s143, 1
          %s1243 = scalar_lea.sflag [#allocation3], %s1242
          %s1244 = sand.u32 %s143, 1
          %s1245 = smul.addr %s1244, 256
          %s1246 = scalar_lea.vmem [#allocation2], %s1245
          %1247 = dma.done %s1243, 4096
        $region56: #{tpu_custom_call.1} parent=51 // pred_fallthru
          _
        // Predicated region
        $region57: #{tpu_custom_call.1} parent=51 // pred_check
          %p1248 = pneg %p184
        $region58: #{tpu_custom_call.1} parent=51 // pred_check_branch
          %1250 = sbr.rel (%p1248) target = $region60
        $region59: #{tpu_custom_call.1} parent=51 // pred_region
          %s1251 = sand.u32 %s169, 1
          %s1252 = scalar_lea.sflag [#allocation5], %s1251
          %s1253 = sand.u32 %s169, 1
          %s1254 = smul.addr %s1253, 256
          %s1255 = scalar_lea.vmem [#allocation4], %s1254
          %1256 = dma.done %s1252, 4096
        $region60: #{tpu_custom_call.1} parent=51 // pred_fallthru
          _
      $region52: #{tpu_custom_call.1} parent=5 // pred_fallthru
        _
    $region6: #{tpu_custom_call.1} parent=1 // loop_footer
      %s23 = sadd.s32 1, %s19
    $region7: #{tpu_custom_call.1} parent=1 // loop_footer_branch
      %18 = sbr.rel target = $region3
    $region8: #{tpu_custom_call.1} parent=1 // loop_exit
      _
    %1257 = vsyncpa [#allocation3], 1
    %s1258 = scalar_lea.sflag [#allocation3], 1
    %1259 = vsyncpa %s1258, 1
    %1260 = vsyncpa [#allocation5], 1
    %s1261 = scalar_lea.sflag [#allocation5], 1
    %1262 = vsyncpa %s1261, 1

</llo_original>
